<compile_context>
chip_gen: v7x
topology: tpu7x:2x2x1
jax: 0.10.0
libtpu: 0.0.40
codegen_flags: <defaults>
</compile_context>

<pallas_src>
import functools

import jax
import jax.numpy as jnp
from jax.experimental import pallas as pl
from jax.experimental.pallas import tpu as pltpu


def _round_up(n, m):
    return (n + m - 1) // m * m


def film_block_kernel(x_ref, gs_ref, bs_ref,
                      wf_ref, wg_ref, wb_ref,
                      bf_ref, bg_ref, bb_ref,
                      o_ref):
    # In-VMEM cast of activations to the (pre-cast) weight dtype for the MXU.
    mxu_dt = wf_ref.dtype
    x = x_ref[...].astype(mxu_dt)
    g = gs_ref[...].astype(mxu_dt)
    b = bs_ref[...].astype(mxu_dt)

    # Three narrow MXU matmuls, f32 accumulation; epilogue only on true-width cols.
    fc = jnp.dot(x, wf_ref[...], preferred_element_type=jnp.float32) + bf_ref[...]
    fc = jnp.maximum(fc, 0.0)                                   # relu(fc(x))
    gammas = jnp.dot(g, wg_ref[...], preferred_element_type=jnp.float32) + bg_ref[...]
    betas = jnp.dot(b, wb_ref[...], preferred_element_type=jnp.float32) + bb_ref[...]

    # out = relu(gammas * fc + betas)
    o_ref[...] = jnp.maximum(gammas * fc + betas, 0.0).astype(o_ref.dtype)


def pack_film_params(params, mxu_dtype=jnp.bfloat16):
    """Hoisted, one-time prep: cast weights to the MXU dtype, keep f32 (1, out) biases.

    `params` = (wf, bf, wg, bg, wb, bb) with weights already (in, out) (i.e. the
    transpose of nn.Linear's (out, in) storage).
    """
    wf, bf, wg, bg, wb, bb = params
    row = lambda v: jnp.asarray(v, jnp.float32).reshape(1, -1)
    return (wf.astype(mxu_dtype), wg.astype(mxu_dtype), wb.astype(mxu_dtype),
            row(bf), row(bg), row(bb))


def film_block(x, gs, bs, packed_params, *, tm=1024):
    """x: (B, in_size), gs: (B, in_gammas), bs: (B, in_betas) -> (B, out_size)."""
    wf, wg, wb, bf, bg, bb = packed_params
    B = x.shape[0]
    in_size, out_size = wf.shape
    in_g = wg.shape[0]
    in_b = wb.shape[0]

    # Batch tile: multiple of 16 (bf16 sublane packing). For B large enough, cap
    # the tile at ~half the batch so the grid has >= 2 steps (both v7x TCs busy).
    if B > 16:
        tm = max(16, min(tm, _round_up(pl.cdiv(B, 2), 16)))
    else:
        tm = _round_up(max(B, 1), 8)
    grid = (pl.cdiv(B, tm),)

    cost = pl.CostEstimate(
        flops=2 * B * (in_size + in_g + in_b) * out_size + 5 * B * out_size,
        transcendentals=0,
        bytes_accessed=(x.size * x.dtype.itemsize
                        + gs.size * gs.dtype.itemsize
                        + bs.size * bs.dtype.itemsize
                        + sum(p.size * p.dtype.itemsize for p in packed_params)
                        + B * out_size * x.dtype.itemsize),
    )

    return pl.pallas_call(
        film_block_kernel,
        out_shape=jax.ShapeDtypeStruct((B, out_size), x.dtype),
        grid=grid,
        in_specs=[
            # Pipelined activation tiles (last dim == full feature dim -> legal).
            pl.BlockSpec((tm, in_size), lambda i: (i, 0)),
            pl.BlockSpec((tm, in_g), lambda i: (i, 0)),
            pl.BlockSpec((tm, in_b), lambda i: (i, 0)),
            # Weights / biases: constant index_map -> fetched once, VMEM-resident.
            pl.BlockSpec((in_size, out_size), lambda i: (0, 0)),
            pl.BlockSpec((in_g, out_size), lambda i: (0, 0)),
            pl.BlockSpec((in_b, out_size), lambda i: (0, 0)),
            pl.BlockSpec((1, out_size), lambda i: (0, 0)),
            pl.BlockSpec((1, out_size), lambda i: (0, 0)),
            pl.BlockSpec((1, out_size), lambda i: (0, 0)),
        ],
        out_specs=pl.BlockSpec((tm, out_size), lambda i: (i, 0)),  # true-width output
        compiler_params=pltpu.CompilerParams(
            dimension_semantics=("parallel",)),                    # shard batch over TCs
        cost_estimate=cost,
    )(x, gs, bs, wf, wg, wb, bf, bg, bb)


def init_linear(key, in_features, out_features, dtype=jnp.float32):
    """Deterministic init mimicking nn.Linear (uniform +/- 1/sqrt(in)).
    Weight is returned already transposed to (in_features, out_features)."""
    kw, kb = jax.random.split(key)
    bound = 1.0 / jnp.sqrt(jnp.float32(in_features))
    w = jax.random.uniform(kw, (in_features, out_features), dtype,
                           minval=-bound, maxval=bound)
    b = jax.random.uniform(kb, (1, out_features), dtype,
                           minval=-bound, maxval=bound)
    return w, b


def reference_film_block(x, gs, bs, params, mxu_dtype=None):
    """Module semantics; optionally cast matmul operands like the kernel's MXU path."""
    wf, bf, wg, bg, wb, bb = params
    cast = (lambda a: a.astype(mxu_dtype)) if mxu_dtype is not None else (lambda a: a)
    dot = lambda a, b: jnp.dot(cast(a), cast(b), preferred_element_type=jnp.float32)
    fc = jax.nn.relu(dot(x, wf) + bf)
    gammas = dot(gs, wg) + bg
    betas = dot(bs, wb) + bb
    return jax.nn.relu(gammas * fc + betas)


if __name__ == "__main__":
    # Small shapes consistent with the module's forward:
    # x: (B, in_size), gs: (B, in_gammas), bs: (B, in_betas)
    B, in_size, out_size, in_betas, in_gammas = 8, 32, 32, 16, 16

    key = jax.random.PRNGKey(0)
    kx, kg, kb, k1, k2, k3 = jax.random.split(key, 6)

    x = jax.random.normal(kx, (B, in_size), jnp.float32)
    gs = jax.random.normal(kg, (B, in_gammas), jnp.float32)
    bs = jax.random.normal(kb, (B, in_betas), jnp.float32)

    wf, bf = init_linear(k1, in_size, out_size)          # self.fc
    wbeta, bbeta = init_linear(k2, in_betas, out_size)   # self.betas_fc
    wg, bg = init_linear(k3, in_gammas, out_size)        # self.gammas_fc
    params = (wf, bf, wg, bg, wbeta, bbeta)

    fwd = jax.jit(film_block)

    # 1) f32 MXU path: tight semantic check against the module reference.
    packed_f32 = pack_film_params(params, mxu_dtype=jnp.float32)
    out_f32 = jax.block_until_ready(fwd(x, gs, bs, packed_f32))
    ref_f32 = reference_film_block(x, gs, bs, params)
    assert out_f32.shape == (B, out_size)
    assert jnp.allclose(out_f32, ref_f32, atol=1e-4, rtol=1e-4), "f32 mismatch vs reference"

    # 2) bf16 MXU path (default fast path on v6e/v7x): compare against a
    #    bf16-operand / f32-accumulate reference.
    packed_bf16 = pack_film_params(params, mxu_dtype=jnp.bfloat16)
    out_bf16 = jax.block_until_ready(fwd(x, gs, bs, packed_bf16))
    ref_bf16 = reference_film_block(x, gs, bs, params, mxu_dtype=jnp.bfloat16)
    assert out_bf16.shape == (B, out_size)
    assert jnp.allclose(out_bf16, ref_bf16, atol=1e-2, rtol=1e-2), "bf16 mismatch vs reference"

    # 3) Multi-step grid + ragged tail block (no batch padding path), f32 MXU.
    B2 = 40
    kx2, kg2, kb2 = jax.random.split(jax.random.PRNGKey(1), 3)
    x2 = jax.random.normal(kx2, (B2, in_size), jnp.float32)
    gs2 = jax.random.normal(kg2, (B2, in_gammas), jnp.float32)
    bs2 = jax.random.normal(kb2, (B2, in_betas), jnp.float32)
    out2 = jax.block_until_ready(fwd(x2, gs2, bs2, packed_f32))
    ref2 = reference_film_block(x2, gs2, bs2, params)
    assert out2.shape == (B2, out_size)
    assert jnp.allclose(out2, ref2, atol=1e-4, rtol=1e-4), "ragged-grid mismatch vs reference"

    print("KERNEL_OK")
</pallas_src>

<mosaic_0001>
module attributes {stable_mosaic.version = 11 : i64} {
  func.func @film_block_kernel(%arg0: i32, %arg1: memref<8x32xf32, #tpu.memory_space<vmem>>, %arg2: memref<8x16xf32, #tpu.memory_space<vmem>>, %arg3: memref<8x16xf32, #tpu.memory_space<vmem>>, %arg4: memref<32x32xf32, #tpu.memory_space<vmem>>, %arg5: memref<16x32xf32, #tpu.memory_space<vmem>>, %arg6: memref<16x32xf32, #tpu.memory_space<vmem>>, %arg7: memref<1x32xf32, #tpu.memory_space<vmem>>, %arg8: memref<1x32xf32, #tpu.memory_space<vmem>>, %arg9: memref<1x32xf32, #tpu.memory_space<vmem>>, %arg10: memref<8x32xf32, #tpu.memory_space<vmem>>) attributes {dimension_semantics = [#tpu.dimension_semantics<parallel>], iteration_bounds = array<i64: 1>, scalar_prefetch = 0 : i64, scratch_operands = 0 : i64, tpu.core_type = #tpu.core_type<tc>, window_params = [{transform_indices = @transform_0, window_bounds = array<i64: 8, 32>}, {transform_indices = @transform_1, window_bounds = array<i64: 8, 16>}, {transform_indices = @transform_2, window_bounds = array<i64: 8, 16>}, {pipeline_mode = #tpu.pipeline_mode<synchronous>, transform_indices = @transform_3, window_bounds = array<i64: 32, 32>}, {pipeline_mode = #tpu.pipeline_mode<synchronous>, transform_indices = @transform_4, window_bounds = array<i64: 16, 32>}, {pipeline_mode = #tpu.pipeline_mode<synchronous>, transform_indices = @transform_5, window_bounds = array<i64: 16, 32>}, {pipeline_mode = #tpu.pipeline_mode<synchronous>, transform_indices = @transform_6, window_bounds = array<i64: 1, 32>}, {pipeline_mode = #tpu.pipeline_mode<synchronous>, transform_indices = @transform_7, window_bounds = array<i64: 1, 32>}, {pipeline_mode = #tpu.pipeline_mode<synchronous>, transform_indices = @transform_8, window_bounds = array<i64: 1, 32>}, {transform_indices = @transform_9, window_bounds = array<i64: 8, 32>}]} {
    %c0 = arith.constant 0 : index
    %c0_0 = arith.constant 0 : index
    %0 = vector.load %arg1[%c0, %c0_0] : memref<8x32xf32, #tpu.memory_space<vmem>>, vector<8x32xf32>
    %c0_1 = arith.constant 0 : index
    %c0_2 = arith.constant 0 : index
    %1 = vector.load %arg2[%c0_1, %c0_2] : memref<8x16xf32, #tpu.memory_space<vmem>>, vector<8x16xf32>
    %c0_3 = arith.constant 0 : index
    %c0_4 = arith.constant 0 : index
    %2 = vector.load %arg3[%c0_3, %c0_4] : memref<8x16xf32, #tpu.memory_space<vmem>>, vector<8x16xf32>
    %c0_5 = arith.constant 0 : index
    %c0_6 = arith.constant 0 : index
    %3 = vector.load %arg4[%c0_5, %c0_6] : memref<32x32xf32, #tpu.memory_space<vmem>>, vector<32x32xf32>
    %cst = arith.constant dense<0.000000e+00> : vector<8x32xf32>
    %4 = tpu.matmul %0, %3, %cst {dimension_numbers = #tpu.dot_dimension_numbers<[1], [0], [0], [1], [0, 0, 1, 1], [], []>} : vector<8x32xf32>, vector<32x32xf32>, vector<8x32xf32> -> vector<8x32xf32>
    %c0_7 = arith.constant 0 : index
    %c0_8 = arith.constant 0 : index
    %5 = vector.load %arg7[%c0_7, %c0_8] : memref<1x32xf32, #tpu.memory_space<vmem>>, vector<1x32xf32>
    %6 = vector.broadcast %5 : vector<1x32xf32> to vector<8x32xf32>
    %7 = arith.addf %4, %6 : vector<8x32xf32>
    %cst_9 = arith.constant 0.000000e+00 : f32
    %8 = vector.broadcast %cst_9 : f32 to vector<8x32xf32>
    %9 = arith.maximumf %7, %8 : vector<8x32xf32>
    %c0_10 = arith.constant 0 : index
    %c0_11 = arith.constant 0 : index
    %10 = vector.load %arg5[%c0_10, %c0_11] : memref<16x32xf32, #tpu.memory_space<vmem>>, vector<16x32xf32>
    %cst_12 = arith.constant dense<0.000000e+00> : vector<8x32xf32>
    %11 = tpu.matmul %1, %10, %cst_12 {dimension_numbers = #tpu.dot_dimension_numbers<[1], [0], [0], [1], [0, 0, 1, 1], [], []>} : vector<8x16xf32>, vector<16x32xf32>, vector<8x32xf32> -> vector<8x32xf32>
    %c0_13 = arith.constant 0 : index
    %c0_14 = arith.constant 0 : index
    %12 = vector.load %arg8[%c0_13, %c0_14] : memref<1x32xf32, #tpu.memory_space<vmem>>, vector<1x32xf32>
    %13 = vector.broadcast %12 : vector<1x32xf32> to vector<8x32xf32>
    %14 = arith.addf %11, %13 : vector<8x32xf32>
    %c0_15 = arith.constant 0 : index
    %c0_16 = arith.constant 0 : index
    %15 = vector.load %arg6[%c0_15, %c0_16] : memref<16x32xf32, #tpu.memory_space<vmem>>, vector<16x32xf32>
    %cst_17 = arith.constant dense<0.000000e+00> : vector<8x32xf32>
    %16 = tpu.matmul %2, %15, %cst_17 {dimension_numbers = #tpu.dot_dimension_numbers<[1], [0], [0], [1], [0, 0, 1, 1], [], []>} : vector<8x16xf32>, vector<16x32xf32>, vector<8x32xf32> -> vector<8x32xf32>
    %c0_18 = arith.constant 0 : index
    %c0_19 = arith.constant 0 : index
    %17 = vector.load %arg9[%c0_18, %c0_19] : memref<1x32xf32, #tpu.memory_space<vmem>>, vector<1x32xf32>
    %18 = vector.broadcast %17 : vector<1x32xf32> to vector<8x32xf32>
    %19 = arith.addf %16, %18 : vector<8x32xf32>
    %20 = arith.mulf %14, %9 : vector<8x32xf32>
    %21 = arith.addf %20, %19 : vector<8x32xf32>
    %cst_20 = arith.constant 0.000000e+00 : f32
    %22 = vector.broadcast %cst_20 : f32 to vector<8x32xf32>
    %23 = arith.maximumf %21, %22 : vector<8x32xf32>
    %c0_21 = arith.constant 0 : index
    %c0_22 = arith.constant 0 : index
    %24 = vector.load %arg10[%c0_21, %c0_22] : memref<8x32xf32, #tpu.memory_space<vmem>>, vector<8x32xf32>
    tpu.vector_store %arg10[%c0_21, %c0_22], %23 {strides = array<i32>} : memref<8x32xf32, #tpu.memory_space<vmem>>, vector<8x32xf32>,
    return
  }
  func.func @transform_0(%arg0: i32) -> (i32, i32) {
    %c0_i32 = arith.constant 0 : i32
    %c0_i32_0 = arith.constant 0 : i32
    return %arg0, %c0_i32 : i32, i32
  }
  func.func @transform_1(%arg0: i32) -> (i32, i32) {
    %c0_i32 = arith.constant 0 : i32
    %c0_i32_0 = arith.constant 0 : i32
    return %arg0, %c0_i32 : i32, i32
  }
  func.func @transform_2(%arg0: i32) -> (i32, i32) {
    %c0_i32 = arith.constant 0 : i32
    %c0_i32_0 = arith.constant 0 : i32
    return %arg0, %c0_i32 : i32, i32
  }
  func.func @transform_3(%arg0: i32) -> (i32, i32) {
    %c0_i32 = arith.constant 0 : i32
    %c0_i32_0 = arith.constant 0 : i32
    %c0_i32_1 = arith.constant 0 : i32
    return %c0_i32, %c0_i32_0 : i32, i32
  }
  func.func @transform_4(%arg0: i32) -> (i32, i32) {
    %c0_i32 = arith.constant 0 : i32
    %c0_i32_0 = arith.constant 0 : i32
    %c0_i32_1 = arith.constant 0 : i32
    return %c0_i32, %c0_i32_0 : i32, i32
  }
  func.func @transform_5(%arg0: i32) -> (i32, i32) {
    %c0_i32 = arith.constant 0 : i32
    %c0_i32_0 = arith.constant 0 : i32
    %c0_i32_1 = arith.constant 0 : i32
    return %c0_i32, %c0_i32_0 : i32, i32
  }
  func.func @transform_6(%arg0: i32) -> (i32, i32) {
    %c0_i32 = arith.constant 0 : i32
    %c0_i32_0 = arith.constant 0 : i32
    %c0_i32_1 = arith.constant 0 : i32
    return %c0_i32, %c0_i32_0 : i32, i32
  }
  func.func @transform_7(%arg0: i32) -> (i32, i32) {
    %c0_i32 = arith.constant 0 : i32
    %c0_i32_0 = arith.constant 0 : i32
    %c0_i32_1 = arith.constant 0 : i32
    return %c0_i32, %c0_i32_0 : i32, i32
  }
  func.func @transform_8(%arg0: i32) -> (i32, i32) {
    %c0_i32 = arith.constant 0 : i32
    %c0_i32_0 = arith.constant 0 : i32
    %c0_i32_1 = arith.constant 0 : i32
    return %c0_i32, %c0_i32_0 : i32, i32
  }
  func.func @transform_9(%arg0: i32) -> (i32, i32) {
    %c0_i32 = arith.constant 0 : i32
    %c0_i32_0 = arith.constant 0 : i32
    return %arg0, %c0_i32 : i32, i32
  }
}

</mosaic_0001>

<llo_original>
// kernel: film_block.1
$region0: #{film_block.1}
  #allocation0 [shape = 'u32[]', space=smem, size = 0x4, offset = 0x4, fixed_abs, tag = 'smem constant byte address 0x4 - core index']
  #allocation1 [shape = 'u32[144,128]{1,0:T(1,128)}', space=vmem, size = 0x12000, scoped, tag = 'internal scratch']
  %s0 = inlined_call_operand.hbm [shape: f32[8,32], index: 0, kind: input, shape index: {}]
  %s1 = inlined_call_operand.hbm [shape: f32[8,16], index: 1, kind: input, shape index: {}]
  %s2 = inlined_call_operand.hbm [shape: f32[8,16], index: 2, kind: input, shape index: {}]
  %s3 = inlined_call_operand.hbm [shape: f32[32,32], index: 3, kind: input, shape index: {}]
  %s4 = inlined_call_operand.hbm [shape: f32[16,32], index: 4, kind: input, shape index: {}]
  %s5 = inlined_call_operand.vmem [shape: f32[16,32], index: 5, kind: input, shape index: {}]
  %s6 = inlined_call_operand.vmem [shape: f32[1,32], index: 6, kind: input, shape index: {}]
  %s7 = inlined_call_operand.vmem [shape: f32[1,32], index: 7, kind: input, shape index: {}]
  %s8 = inlined_call_operand.vmem [shape: f32[1,32], index: 8, kind: input, shape index: {}]
  %s9 = inlined_call_operand.hbm [shape: f32[8,32], index: 9, kind: output, shape index: {}]
  %s10 = sld [smem:[#allocation0]]
  $region66: #{film_block.1} parent=0
    _
  %s12 = ssub.s32 1, %s10
  %s13 = scalar_select 0, %s12, %s10
  $region1: #{film_block.1} parent=0
    #allocation2 [shape = 'u8[4096]{0}', space=vmem, size = 0x1000, scoped, tag = 'input window, operand 0, single buffered']
    #allocation3 [shape = 's32[1]{0}', space=sflag, size = 0x4, scoped, tag = 'scoped memory for film_block.1']
    #allocation4 [shape = 's32[1]{0}', space=sflag, size = 0x4, scoped, tag = 'scoped memory for film_block.1']
    #allocation5 [shape = 'u8[4096]{0}', space=vmem, size = 0x1000, scoped, tag = 'input window, operand 1, single buffered']
    #allocation6 [shape = 's32[1]{0}', space=sflag, size = 0x4, scoped, tag = 'scoped memory for film_block.1']
    #allocation7 [shape = 'u8[4096]{0}', space=vmem, size = 0x1000, scoped, tag = 'input window, operand 2, single buffered']
    #allocation8 [shape = 'u8[16384]{0}', space=vmem, size = 0x4000, scoped, tag = 'input window, operand 3, single buffered']
    #allocation9 [shape = 's32[1]{0}', space=sflag, size = 0x4, scoped, tag = 'scoped memory for film_block.1']
    #allocation10 [shape = 'u8[8192]{0}', space=vmem, size = 0x2000, scoped, tag = 'input window, operand 4, single buffered']
    #allocation11 [shape = 'u8[4096]{0}', space=vmem, size = 0x1000, scoped, tag = 'output window, operand 0, single buffered']
    %14 = vsyncpa [#allocation3], 0
    %15 = vsyncpa [#allocation6], 0
    %16 = vsyncpa [#allocation9], 0
    %17 = vsyncpa [#allocation4], 0
    // Predicated region
    $region2: #{film_block.1} parent=1 // pred_check
      _
    $region3: #{film_block.1} parent=1 // pred_check_branch
      %19 = sbr.rel (0) target = $region5
    $region4: #{film_block.1} parent=1 // pred_region
      %s21 = ssub.s32 128, 128
      %22 = vsyncadd [#allocation3], %s21
      %s24 = sshll.u32 [#allocation2], 4
      %s25 = int_to_ptr.vmem [resolvable:$true] %s24
      %27 = dma.hbm_to_vmem [thread:$0]  %s0, 128, %s25, [#allocation3]
    $region5: #{film_block.1} parent=1 // pred_fallthru
      _
    // Predicated region
    $region6: #{film_block.1} parent=1 // pred_check
      _
    $region7: #{film_block.1} parent=1 // pred_check_branch
      %29 = sbr.rel (0) target = $region9
    $region8: #{film_block.1} parent=1 // pred_region
      %s31 = ssub.s32 128, 128
      %32 = vsyncadd [#allocation6], %s31
      %s34 = sshll.u32 [#allocation5], 4
      %s35 = int_to_ptr.vmem [resolvable:$true] %s34
      %37 = dma.hbm_to_vmem [thread:$0]  %s1, 128, %s35, [#allocation6]
    $region9: #{film_block.1} parent=1 // pred_fallthru
      _
    // Predicated region
    $region10: #{film_block.1} parent=1 // pred_check
      _
    $region11: #{film_block.1} parent=1 // pred_check_branch
      %39 = sbr.rel (0) target = $region13
    $region12: #{film_block.1} parent=1 // pred_region
      %s41 = ssub.s32 128, 128
      %42 = vsyncadd [#allocation6], %s41
      %s44 = sshll.u32 [#allocation7], 4
      %s45 = int_to_ptr.vmem [resolvable:$true] %s44
      %47 = dma.hbm_to_vmem [thread:$0]  %s2, 128, %s45, [#allocation6]
    $region13: #{film_block.1} parent=1 // pred_fallthru
      _
    // Predicated region
    $region14: #{film_block.1} parent=1 // pred_check
      _
    $region15: #{film_block.1} parent=1 // pred_check_branch
      %49 = sbr.rel (0) target = $region17
    $region16: #{film_block.1} parent=1 // pred_region
      %s51 = ssub.s32 512, 512
      %52 = vsyncadd [#allocation9], %s51
      %s53 = sshll.u32 [#allocation8], 4
      %s54 = int_to_ptr.vmem [resolvable:$true] %s53
      %59 = dma.hbm_to_vmem [thread:$0]  %s3, 512, %s54, [#allocation9], 128, 128, 8
    $region17: #{film_block.1} parent=1 // pred_fallthru
      _
    // Predicated region
    $region18: #{film_block.1} parent=1 // pred_check
      _
    $region19: #{film_block.1} parent=1 // pred_check_branch
      %61 = sbr.rel (0) target = $region21
    $region20: #{film_block.1} parent=1 // pred_region
      %s63 = ssub.s32 256, 256
      %64 = vsyncadd [#allocation9], %s63
      %s65 = sshll.u32 [#allocation10], 4
      %s66 = int_to_ptr.vmem [resolvable:$true] %s65
      %71 = dma.hbm_to_vmem [thread:$0]  %s4, 256, %s66, [#allocation9], 128, 128, 8
    $region21: #{film_block.1} parent=1 // pred_fallthru
      _
    // Predicated region
    $region22: #{film_block.1} parent=1 // pred_check
      _
    $region23: #{film_block.1} parent=1 // pred_check_branch
      %73 = sbr.rel (0) target = $region25
    $region24: #{film_block.1} parent=1 // pred_region
      _
    $region25: #{film_block.1} parent=1 // pred_fallthru
      _
    // Predicated region
    $region26: #{film_block.1} parent=1 // pred_check
      _
    $region27: #{film_block.1} parent=1 // pred_check_branch
      %75 = sbr.rel (0) target = $region29
    $region28: #{film_block.1} parent=1 // pred_region
      _
    $region29: #{film_block.1} parent=1 // pred_fallthru
      _
    // Predicated region
    $region30: #{film_block.1} parent=1 // pred_check
      _
    $region31: #{film_block.1} parent=1 // pred_check_branch
      %77 = sbr.rel (0) target = $region33
    $region32: #{film_block.1} parent=1 // pred_region
      _
    $region33: #{film_block.1} parent=1 // pred_fallthru
      _
    // Predicated region
    $region34: #{film_block.1} parent=1 // pred_check
      _
    $region35: #{film_block.1} parent=1 // pred_check_branch
      %79 = sbr.rel (0) target = $region37
    $region36: #{film_block.1} parent=1 // pred_region
      _
    $region37: #{film_block.1} parent=1 // pred_fallthru
      _
    // Predicated region
    $region38: #{film_block.1} parent=1 // pred_check
      _
    $region39: #{film_block.1} parent=1 // pred_check_branch
      %81 = sbr.rel (0) target = $region41
    $region40: #{film_block.1} parent=1 // pred_region
      %82 = dma.done [#allocation3], 128
    $region41: #{film_block.1} parent=1 // pred_fallthru
      _
    // Predicated region
    $region42: #{film_block.1} parent=1 // pred_check
      _
    $region43: #{film_block.1} parent=1 // pred_check_branch
      %84 = sbr.rel (0) target = $region45
    $region44: #{film_block.1} parent=1 // pred_region
      %85 = dma.done [#allocation6], 128
    $region45: #{film_block.1} parent=1 // pred_fallthru
      _
    // Predicated region
    $region46: #{film_block.1} parent=1 // pred_check
      _
    $region47: #{film_block.1} parent=1 // pred_check_branch
      %87 = sbr.rel (0) target = $region49
    $region48: #{film_block.1} parent=1 // pred_region
      %88 = dma.done [#allocation6], 128
    $region49: #{film_block.1} parent=1 // pred_fallthru
      _
    // Predicated region
    $region50: #{film_block.1} parent=1 // pred_check
      _
    $region51: #{film_block.1} parent=1 // pred_check_branch
      %90 = sbr.rel (0) target = $region53
    $region52: #{film_block.1} parent=1 // pred_region
      %91 = dma.done [#allocation9], 512
    $region53: #{film_block.1} parent=1 // pred_fallthru
      _
    // Predicated region
    $region54: #{film_block.1} parent=1 // pred_check
      _
    $region55: #{film_block.1} parent=1 // pred_check_branch
      %93 = sbr.rel (0) target = $region57
    $region56: #{film_block.1} parent=1 // pred_region
      %94 = dma.done [#allocation9], 256
    $region57: #{film_block.1} parent=1 // pred_fallthru
      _
    %v95 = vld [vmem:[#allocation2] sm:$0xff]
    %v96 = vld [vmem:[#allocation5] sm:$0xff]
    %v97 = vld [vmem:[#allocation7] sm:$0xff]
    %v98 = vld [vmem:[#allocation8] sm:$0xff]
    %v99 = vld [vmem:[#allocation8 + $0x8] sm:$0xff]
    %v100 = vld [vmem:[#allocation8 + $0x10] sm:$0xff]
    %v101 = vld [vmem:[#allocation8 + $0x18] sm:$0xff]
    %v102 = vld [vmem:[%s6] sm:$0x1]
    %v104 = vlaneseq
    %v105 = vshrl.u32 %v104, 7
    %v106 = vsub.s32 0, %v105
    %v107 = vrot.slane %v102, %v106
    %vm109 = vcmask 261120
    %v111 = vsel %vm109, %v95, 0
    %113 = vmatprep.subr.mxu0 0.0
    %114 = vmatpush1.msra.mxu0 %v98
    %115 = vmatprep.subr.mxu0 0.0
    %116 = vmatpush1.msra.mxu0 %v99
    %117 = vmatprep.subr.mxu0 0.0
    %118 = vmatpush1.msra.mxu0 %v100
    %119 = vmatprep.subr.mxu0 0.0
    %120 = vmatpush1.msra.mxu0 %v101
    %121 = vmatprep.subr.mxu0 0.0
    %122 = vmatpush1.msra.mxu0 0.0
    %123 = vmatprep.subr.mxu0 0.0
    %124 = vmatpush1.msra.mxu0 0.0
    %125 = vmatprep.subr.mxu0 0.0
    %126 = vmatpush1.msra.mxu0 0.0
    %127 = vmatprep.subr.mxu0 0.0
    %128 = vmatpush1.msra.mxu0 0.0
    %129 = vmatprep.subr.mxu0 0.0
    %130 = vmatpush1.msra.mxu0 0.0
    %131 = vmatprep.subr.mxu0 0.0
    %132 = vmatpush1.msra.mxu0 0.0
    %133 = vmatprep.subr.mxu0 0.0
    %134 = vmatpush1.msra.mxu0 0.0
    %135 = vmatprep.subr.mxu0 0.0
    %136 = vmatpush1.msra.mxu0 0.0
    %137 = vmatprep.subr.mxu0 0.0
    %138 = vmatpush1.msra.mxu0 0.0
    %139 = vmatprep.subr.mxu0 0.0
    %140 = vmatpush1.msra.mxu0 0.0
    %141 = vmatprep.subr.mxu0 0.0
    %142 = vmatpush1.msra.mxu0 0.0
    %143 = vmatprep.subr.mxu0 0.0
    %144 = vmatpush1.msra.mxu0 0.0
    %145 = vmatprep.subr.mxu0 0.0
    %146 = vmatpush1.msra.mxu0 0.0
    %147 = vmatprep.subr.mxu0 0.0
    %148 = vmatpush1.msra.mxu0 0.0
    %149 = vmatprep.subr.mxu0 0.0
    %150 = vmatpush1.msra.mxu0 0.0
    %151 = vmatprep.subr.mxu0 0.0
    %152 = vmatpush1.msra.mxu0 0.0
    %153 = vmatprep.subr.mxu0 0.0
    %154 = vmatpush1.msra.mxu0 0.0
    %155 = vmatprep.subr.mxu0 0.0
    %156 = vmatpush1.msra.mxu0 0.0
    %157 = vmatprep.subr.mxu0 0.0
    %158 = vmatpush1.msra.mxu0 0.0
    %159 = vmatprep.subr.mxu0 0.0
    %160 = vmatpush1.msra.mxu0 0.0
    %161 = vmatprep.subr.mxu0 0.0
    %162 = vmatpush1.msra.mxu0 0.0
    %163 = vmatprep.subr.mxu0 0.0
    %164 = vmatpush1.msra.mxu0 0.0
    %165 = vmatprep.subr.mxu0 0.0
    %166 = vmatpush1.msra.mxu0 0.0
    %167 = vmatprep.subr.mxu0 0.0
    %168 = vmatpush1.msra.mxu0 0.0
    %169 = vmatprep.subr.mxu0 0.0
    %170 = vmatpush1.msra.mxu0 0.0
    %171 = vmatprep.subr.mxu0 0.0
    %172 = vmatpush1.msra.mxu0 0.0
    %173 = vmatprep.subr.mxu0 0.0
    %174 = vmatpush1.msra.mxu0 0.0
    %175 = vmatprep.subr.mxu0 0.0
    %176 = vmatpush1.msra.mxu0 0.0
    %177 = vmatprep.mubr.f32.mxu0 0.0
    %178 = vmatmul.mubr.f32.gmra.mrb[0].mxu0 %v111
    %v179 = vpop.f32.mrb[0].mxu0
    %v180 = vadd.f32 %v107, %v179
    %v181 = vpop.f32.mrb[0].mxu0
    %182 = vdwg.mxu0
    %v183 = vmax.f32 %v180, 0.0
    %v184 = vld [vmem:[#allocation10] sm:$0xff]
    %v185 = vld [vmem:[#allocation10 + $0x8] sm:$0xff]
    %v186 = vld [vmem:[%s7] sm:$0x1]
    %v188 = vlaneseq
    %v189 = vshrl.u32 %v188, 7
    %v190 = vsub.s32 0, %v189
    %v191 = vrot.slane %v186, %v190
    %vm193 = vcmask 130048
    %v195 = vsel %vm193, %v96, 0
    %197 = vmatprep.subr.mxu0 0.0
    %198 = vmatpush1.msra.mxu0 %v184
    %199 = vmatprep.subr.mxu0 0.0
    %200 = vmatpush1.msra.mxu0 %v185
    %201 = vmatprep.subr.mxu0 0.0
    %202 = vmatpush1.msra.mxu0 0.0
    %203 = vmatprep.subr.mxu0 0.0
    %204 = vmatpush1.msra.mxu0 0.0
    %205 = vmatprep.subr.mxu0 0.0
    %206 = vmatpush1.msra.mxu0 0.0
    %207 = vmatprep.subr.mxu0 0.0
    %208 = vmatpush1.msra.mxu0 0.0
    %209 = vmatprep.subr.mxu0 0.0
    %210 = vmatpush1.msra.mxu0 0.0
    %211 = vmatprep.subr.mxu0 0.0
    %212 = vmatpush1.msra.mxu0 0.0
    %213 = vmatprep.subr.mxu0 0.0
    %214 = vmatpush1.msra.mxu0 0.0
    %215 = vmatprep.subr.mxu0 0.0
    %216 = vmatpush1.msra.mxu0 0.0
    %217 = vmatprep.subr.mxu0 0.0
    %218 = vmatpush1.msra.mxu0 0.0
    %219 = vmatprep.subr.mxu0 0.0
    %220 = vmatpush1.msra.mxu0 0.0
    %221 = vmatprep.subr.mxu0 0.0
    %222 = vmatpush1.msra.mxu0 0.0
    %223 = vmatprep.subr.mxu0 0.0
    %224 = vmatpush1.msra.mxu0 0.0
    %225 = vmatprep.subr.mxu0 0.0
    %226 = vmatpush1.msra.mxu0 0.0
    %227 = vmatprep.subr.mxu0 0.0
    %228 = vmatpush1.msra.mxu0 0.0
    %229 = vmatprep.subr.mxu0 0.0
    %230 = vmatpush1.msra.mxu0 0.0
    %231 = vmatprep.subr.mxu0 0.0
    %232 = vmatpush1.msra.mxu0 0.0
    %233 = vmatprep.subr.mxu0 0.0
    %234 = vmatpush1.msra.mxu0 0.0
    %235 = vmatprep.subr.mxu0 0.0
    %236 = vmatpush1.msra.mxu0 0.0
    %237 = vmatprep.subr.mxu0 0.0
    %238 = vmatpush1.msra.mxu0 0.0
    %239 = vmatprep.subr.mxu0 0.0
    %240 = vmatpush1.msra.mxu0 0.0
    %241 = vmatprep.subr.mxu0 0.0
    %242 = vmatpush1.msra.mxu0 0.0
    %243 = vmatprep.subr.mxu0 0.0
    %244 = vmatpush1.msra.mxu0 0.0
    %245 = vmatprep.subr.mxu0 0.0
    %246 = vmatpush1.msra.mxu0 0.0
    %247 = vmatprep.subr.mxu0 0.0
    %248 = vmatpush1.msra.mxu0 0.0
    %249 = vmatprep.subr.mxu0 0.0
    %250 = vmatpush1.msra.mxu0 0.0
    %251 = vmatprep.subr.mxu0 0.0
    %252 = vmatpush1.msra.mxu0 0.0
    %253 = vmatprep.subr.mxu0 0.0
    %254 = vmatpush1.msra.mxu0 0.0
    %255 = vmatprep.subr.mxu0 0.0
    %256 = vmatpush1.msra.mxu0 0.0
    %257 = vmatprep.subr.mxu0 0.0
    %258 = vmatpush1.msra.mxu0 0.0
    %259 = vmatprep.subr.mxu0 0.0
    %260 = vmatpush1.msra.mxu0 0.0
    %261 = vmatprep.mubr.f32.mxu0 0.0
    %262 = vmatmul.mubr.f32.gmra.mrb[0].mxu0 %v195
    %v263 = vpop.f32.mrb[0].mxu0
    %v264 = vadd.f32 %v191, %v263
    %v265 = vpop.f32.mrb[0].mxu0
    %266 = vdwg.mxu0
    %v267 = vld [vmem:[%s5] sm:$0xff]
    %v268 = vld [vmem:[%s5 + $0x8] sm:$0xff]
    %v269 = vld [vmem:[%s8] sm:$0x1]
    %v271 = vlaneseq
    %v272 = vshrl.u32 %v271, 7
    %v273 = vsub.s32 0, %v272
    %v274 = vrot.slane %v269, %v273
    %v277 = vsel %vm193, %v97, 0
    %279 = vmatprep.subr.mxu0 0.0
    %280 = vmatpush1.msra.mxu0 %v267
    %281 = vmatprep.subr.mxu0 0.0
    %282 = vmatpush1.msra.mxu0 %v268
    %283 = vmatprep.subr.mxu0 0.0
    %284 = vmatpush1.msra.mxu0 0.0
    %285 = vmatprep.subr.mxu0 0.0
    %286 = vmatpush1.msra.mxu0 0.0
    %287 = vmatprep.subr.mxu0 0.0
    %288 = vmatpush1.msra.mxu0 0.0
    %289 = vmatprep.subr.mxu0 0.0
    %290 = vmatpush1.msra.mxu0 0.0
    %291 = vmatprep.subr.mxu0 0.0
    %292 = vmatpush1.msra.mxu0 0.0
    %293 = vmatprep.subr.mxu0 0.0
    %294 = vmatpush1.msra.mxu0 0.0
    %295 = vmatprep.subr.mxu0 0.0
    %296 = vmatpush1.msra.mxu0 0.0
    %297 = vmatprep.subr.mxu0 0.0
    %298 = vmatpush1.msra.mxu0 0.0
    %299 = vmatprep.subr.mxu0 0.0
    %300 = vmatpush1.msra.mxu0 0.0
    %301 = vmatprep.subr.mxu0 0.0
    %302 = vmatpush1.msra.mxu0 0.0
    %303 = vmatprep.subr.mxu0 0.0
    %304 = vmatpush1.msra.mxu0 0.0
    %305 = vmatprep.subr.mxu0 0.0
    %306 = vmatpush1.msra.mxu0 0.0
    %307 = vmatprep.subr.mxu0 0.0
    %308 = vmatpush1.msra.mxu0 0.0
    %309 = vmatprep.subr.mxu0 0.0
    %310 = vmatpush1.msra.mxu0 0.0
    %311 = vmatprep.subr.mxu0 0.0
    %312 = vmatpush1.msra.mxu0 0.0
    %313 = vmatprep.subr.mxu0 0.0
    %314 = vmatpush1.msra.mxu0 0.0
    %315 = vmatprep.subr.mxu0 0.0
    %316 = vmatpush1.msra.mxu0 0.0
    %317 = vmatprep.subr.mxu0 0.0
    %318 = vmatpush1.msra.mxu0 0.0
    %319 = vmatprep.subr.mxu0 0.0
    %320 = vmatpush1.msra.mxu0 0.0
    %321 = vmatprep.subr.mxu0 0.0
    %322 = vmatpush1.msra.mxu0 0.0
    %323 = vmatprep.subr.mxu0 0.0
    %324 = vmatpush1.msra.mxu0 0.0
    %325 = vmatprep.subr.mxu0 0.0
    %326 = vmatpush1.msra.mxu0 0.0
    %327 = vmatprep.subr.mxu0 0.0
    %328 = vmatpush1.msra.mxu0 0.0
    %329 = vmatprep.subr.mxu0 0.0
    %330 = vmatpush1.msra.mxu0 0.0
    %331 = vmatprep.subr.mxu0 0.0
    %332 = vmatpush1.msra.mxu0 0.0
    %333 = vmatprep.subr.mxu0 0.0
    %334 = vmatpush1.msra.mxu0 0.0
    %335 = vmatprep.subr.mxu0 0.0
    %336 = vmatpush1.msra.mxu0 0.0
    %337 = vmatprep.subr.mxu0 0.0
    %338 = vmatpush1.msra.mxu0 0.0
    %339 = vmatprep.subr.mxu0 0.0
    %340 = vmatpush1.msra.mxu0 0.0
    %341 = vmatprep.subr.mxu0 0.0
    %342 = vmatpush1.msra.mxu0 0.0
    %343 = vmatprep.mubr.f32.mxu0 0.0
    %344 = vmatmul.mubr.f32.gmra.mrb[0].mxu0 %v277
    %v345 = vpop.f32.mrb[0].mxu0
    %v346 = vadd.f32 %v274, %v345
    %v347 = vpop.f32.mrb[0].mxu0
    %348 = vdwg.mxu0
    %v349 = vmul.f32 %v264, %v183
    %v350 = vadd.f32 %v349, %v346
    %v351 = vmax.f32 %v350, 0.0
    %352 = vst.msk [vmem:[#allocation11] sm:$0xff] %vm109, %v351
    // Predicated region
    $region58: #{film_block.1} parent=1 // pred_check
      _
    $region59: #{film_block.1} parent=1 // pred_check_branch
      %354 = sbr.rel (0) target = $region61
    $region60: #{film_block.1} parent=1 // pred_region
      %s356 = ssub.s32 128, 128
      %357 = vsyncadd [#allocation4], %s356
      %s359 = sshll.u32 [#allocation11], 4
      %s360 = int_to_ptr.vmem [resolvable:$true] %s359
      %362 = dma.vmem_to_hbm [thread:$0]  %s360, 128, %s9, [#allocation4]
    $region61: #{film_block.1} parent=1 // pred_fallthru
      _
    // Predicated region
    $region62: #{film_block.1} parent=1 // pred_check
      _
    $region63: #{film_block.1} parent=1 // pred_check_branch
      %364 = sbr.rel (0) target = $region65
    $region64: #{film_block.1} parent=1 // pred_region
      %365 = dma.done [#allocation4], 128
    $region65: #{film_block.1} parent=1 // pred_fallthru
      _
    %366 = vsyncpa [#allocation3], 1
    %367 = vsyncpa [#allocation6], 1
    %368 = vsyncpa [#allocation9], 1
    %369 = vsyncpa [#allocation4], 1

</llo_original>
